<compile_context>
chip_gen: v6e
topology: v6e:2x2x1
jax: 0.10.0
libtpu: 0.0.40
codegen_flags: <defaults>
</compile_context>

<pallas_src>
import functools

import jax
import jax.numpy as jnp
from jax.experimental import pallas as pl
from jax.experimental.pallas import tpu as pltpu


def quantize_weight_rtn_symmetric(w_fp, n_bits=8, eps=1e-5):
    """Per-channel (dim=0 of (N, K) weight) symmetric RTN quantization.

    Mirrors torch.ao.quantization.utils.determine_qparams with
    qscheme=per_channel_symmetric + quantize_per_channel (axis=0).
    """
    int_min = -(2 ** (n_bits - 1))          # -128
    int_max = 2 ** (n_bits - 1) - 1         # 127
    min_val = jnp.min(w_fp, axis=1)
    max_val = jnp.max(w_fp, axis=1)
    # symmetric: scale = max(-min, max) / ((qmax - qmin) / 2)
    max_abs = jnp.maximum(-jnp.minimum(min_val, 0.0), jnp.maximum(max_val, 0.0))
    scale = jnp.maximum(max_abs / ((int_max - int_min) / 2.0), eps)
    w_int = jnp.clip(
        jnp.round(w_fp / scale[:, None]), int_min, int_max
    ).astype(jnp.int8)
    return w_int, scale.astype(w_fp.dtype)


def _qmatmul_kernel(x_ref, wt_ref, scale_ref, o_ref):
    # x_ref:     (tm, tk) f32/bf16  activations (cast to bf16 in-kernel if needed)
    # wt_ref:    (tk, tn) int8      pre-transposed quantized weight (K, N)
    # scale_ref: (1,  tn) f32       per-output-channel scale
    # o_ref:     (tm, tn) f32       resident across the K axis -> accumulator
    k = pl.program_id(2)

    @pl.when(k == 0)
    def _():
        o_ref[...] = jnp.zeros_like(o_ref)

    x = x_ref[...]
    if x.dtype != jnp.bfloat16:
        x = x.astype(jnp.bfloat16)
    # int8 -> bf16 dequant is exact; bf16 x bf16 MXU matmul with f32 accumulation.
    w = wt_ref[...].astype(jnp.bfloat16)
    o_ref[...] += jnp.dot(x, w, preferred_element_type=jnp.float32)

    @pl.when(k == pl.num_programs(2) - 1)
    def _():
        # Per-channel rescale applied once, on the finished accumulator.
        o_ref[...] *= scale_ref[...]


@functools.partial(jax.jit, static_argnames=("tm", "tn", "tk"))
def quantized_linear(x, w_int_t, scale, *, tm=256, tn=1024, tk=1024):
    """out = (x @ w_int.T) * scale, matching XlaQuantizedLinear (symmetric, fp act).

    Args:
      x:       (M, K) float activations.
      w_int_t: (K, N) int8 weight, already transposed from the (N, K) Linear layout.
      scale:   (N,) per-output-channel scale.
    """
    M, K = x.shape
    Kw, N = w_int_t.shape
    assert K == Kw, (K, Kw)

    # Clamp tile sizes to the problem.
    tm = min(tm, M)
    tn = min(tn, N)
    tk = min(tk, K)
    # v7x megacore: if the M axis has only one block, make sure the N axis has
    # >= 2 blocks so both TensorCores get work (no effect on v5e/v6e).
    if M // tm == 1 and N // tn == 1 and N >= 256 and (N // 2) % 128 == 0:
        tn = N // 2
    assert M % tm == 0 and N % tn == 0 and K % tk == 0, (M, N, K, tm, tn, tk)
    # TODO(synk): pad/mask non-divisible production shapes instead of asserting.

    k_steps = K // tk
    scale2d = scale.reshape(1, N).astype(jnp.float32)

    # Advisory estimate accounting for block revisits across the grid.
    x_bytes = x.dtype.itemsize
    cost = pl.CostEstimate(
        flops=2 * M * N * K,
        transcendentals=0,
        bytes_accessed=(M * K * x_bytes) * (N // tn)   # activations re-read per N tile
        + (K * N * 1) * (M // tm)                      # int8 weight re-read per M tile
        + M * N * 4                                    # f32 output writeback
        + N * 4 * (M // tm),                           # scale re-read per M tile
    )

    # Deeper buffering on the dominant HBM stream (int8 weight) when the K axis
    # is long enough to benefit.
    w_spec_kwargs = {}
    if k_steps >= 3:
        w_spec_kwargs = dict(pipeline_mode=pl.Buffered(3))

    return pl.pallas_call(
        _qmatmul_kernel,
        out_shape=jax.ShapeDtypeStruct((M, N), jnp.float32),
        grid_spec=pltpu.PrefetchScalarGridSpec(
            num_scalar_prefetch=0,
            grid=(M // tm, N // tn, K // tk),
            in_specs=[
                pl.BlockSpec((tm, tk), lambda i, j, k: (i, k)),                    # activations
                pl.BlockSpec((tk, tn), lambda i, j, k: (k, j), **w_spec_kwargs),   # int8 weight (K, N)
                pl.BlockSpec((1, tn), lambda i, j, k: (0, j)),                     # per-channel scale
            ],
            out_specs=pl.BlockSpec((tm, tn), lambda i, j, k: (i, j)),
        ),
        compiler_params=pltpu.CompilerParams(
            dimension_semantics=("parallel", "parallel", "arbitrary"),
            vmem_limit_bytes=32 * 1024 * 1024,
        ),
        cost_estimate=cost,
    )(x, w_int_t, scale2d)


if __name__ == "__main__":
    # Small shapes consistent with the module: batch=8, input_dim=256, output_dim=128.
    batch, input_dim, output_dim = 8, 256, 128

    key = jax.random.PRNGKey(0)
    kx, kw = jax.random.split(key)
    x = jax.random.normal(kx, (batch, input_dim), dtype=jnp.float32)
    # Deterministic "Linear" weight init (out_features, in_features), like nn.Linear.
    w_fp = jax.random.uniform(
        kw, (output_dim, input_dim), dtype=jnp.float32,
        minval=-1.0 / jnp.sqrt(input_dim), maxval=1.0 / jnp.sqrt(input_dim),
    )

    # One-time RTN weight quantization + transpose to (K, N) (setup, plain JAX).
    w_int, scale = quantize_weight_rtn_symmetric(w_fp, n_bits=8)
    w_int_t = jnp.asarray(w_int.T)                       # (K, N) int8

    out = quantized_linear(x, w_int_t, scale)
    out = jax.block_until_ready(out)

    # Sanity check vs dequantized-weight reference (activations cast to bf16 to
    # match the in-kernel bf16 MXU path; weight dequant int8->f32 is exact).
    x_ref = x.astype(jnp.bfloat16).astype(jnp.float32)
    w_deq = w_int.astype(jnp.float32) * scale[:, None]
    ref = x_ref @ w_deq.T
    assert jnp.allclose(out, ref, atol=1e-2, rtol=1e-2), "mismatch vs reference"

    print("KERNEL_OK")
</pallas_src>

<mosaic_0001>
module attributes {stable_mosaic.version = 11 : i64} {
  func.func @_qmatmul_kernel(%arg0: i32, %arg1: i32, %arg2: i32, %arg3: memref<8x256xf32, #tpu.memory_space<vmem>>, %arg4: memref<256x128xi8, #tpu.memory_space<vmem>>, %arg5: memref<1x128xf32, #tpu.memory_space<vmem>>, %arg6: memref<8x128xf32, #tpu.memory_space<vmem>>) attributes {dimension_semantics = [#tpu.dimension_semantics<parallel>, #tpu.dimension_semantics<parallel>, #tpu.dimension_semantics<arbitrary>], iteration_bounds = array<i64: 1, 1, 1>, scalar_prefetch = 0 : i64, scratch_operands = 0 : i64, tpu.core_type = #tpu.core_type<tc>, window_params = [{transform_indices = @transform_0, window_bounds = array<i64: 8, 256>}, {transform_indices = @transform_1, window_bounds = array<i64: 256, 128>}, {transform_indices = @transform_2, window_bounds = array<i64: 1, 128>}, {transform_indices = @transform_3, window_bounds = array<i64: 8, 128>}]} {
    %c0_i32 = arith.constant 0 : i32
    %0 = arith.cmpi eq, %arg2, %c0_i32 : i32
    %1 = arith.extui %0 : i1 to i32
    %c0_i32_0 = arith.constant 0 : i32
    %2 = arith.cmpi ne, %1, %c0_i32_0 : i32
    scf.if %2 {
      %cst_10 = arith.constant 0.000000e+00 : f32
      %14 = vector.broadcast %cst_10 : f32 to vector<8x128xf32>
      %c0_11 = arith.constant 0 : index
      %c0_12 = arith.constant 0 : index
      %15 = vector.load %arg6[%c0_11, %c0_12] : memref<8x128xf32, #tpu.memory_space<vmem>>, vector<8x128xf32>
      tpu.vector_store %arg6[%c0_11, %c0_12], %14 {strides = array<i32>} : memref<8x128xf32, #tpu.memory_space<vmem>>, vector<8x128xf32>,
    } else {
    }
    %c0 = arith.constant 0 : index
    %c0_1 = arith.constant 0 : index
    %3 = vector.load %arg3[%c0, %c0_1] : memref<8x256xf32, #tpu.memory_space<vmem>>, vector<8x256xf32>
    %4 = arith.truncf %3 : vector<8x256xf32> to vector<8x256xbf16>
    %c0_2 = arith.constant 0 : index
    %c0_3 = arith.constant 0 : index
    %5 = vector.load %arg4[%c0_2, %c0_3] : memref<256x128xi8, #tpu.memory_space<vmem>>, vector<256x128xi8>
    %6 = arith.sitofp %5 : vector<256x128xi8> to vector<256x128xbf16>
    %c0_4 = arith.constant 0 : index
    %c0_5 = arith.constant 0 : index
    %7 = vector.load %arg6[%c0_4, %c0_5] : memref<8x128xf32, #tpu.memory_space<vmem>>, vector<8x128xf32>
    %cst = arith.constant dense<0.000000e+00> : vector<8x128xf32>
    %8 = tpu.matmul %4, %6, %cst {dimension_numbers = #tpu.dot_dimension_numbers<[1], [0], [0], [1], [0, 0, 1, 1], [], []>} : vector<8x256xbf16>, vector<256x128xbf16>, vector<8x128xf32> -> vector<8x128xf32>
    %9 = arith.addf %7, %8 : vector<8x128xf32>
    %c0_6 = arith.constant 0 : index
    %c0_7 = arith.constant 0 : index
    %10 = vector.load %arg6[%c0_6, %c0_7] : memref<8x128xf32, #tpu.memory_space<vmem>>, vector<8x128xf32>
    tpu.vector_store %arg6[%c0_6, %c0_7], %9 {strides = array<i32>} : memref<8x128xf32, #tpu.memory_space<vmem>>, vector<8x128xf32>,
    %c0_i32_8 = arith.constant 0 : i32
    %11 = arith.cmpi eq, %arg2, %c0_i32_8 : i32
    %12 = arith.extui %11 : i1 to i32
    %c0_i32_9 = arith.constant 0 : i32
    %13 = arith.cmpi ne, %12, %c0_i32_9 : i32
    scf.if %13 {
      %c0_10 = arith.constant 0 : index
      %c0_11 = arith.constant 0 : index
      %14 = vector.load %arg6[%c0_10, %c0_11] : memref<8x128xf32, #tpu.memory_space<vmem>>, vector<8x128xf32>
      %c0_12 = arith.constant 0 : index
      %c0_13 = arith.constant 0 : index
      %15 = vector.load %arg5[%c0_12, %c0_13] : memref<1x128xf32, #tpu.memory_space<vmem>>, vector<1x128xf32>
      %16 = vector.broadcast %15 : vector<1x128xf32> to vector<8x128xf32>
      %17 = arith.mulf %14, %16 : vector<8x128xf32>
      %c0_14 = arith.constant 0 : index
      %c0_15 = arith.constant 0 : index
      %18 = vector.load %arg6[%c0_14, %c0_15] : memref<8x128xf32, #tpu.memory_space<vmem>>, vector<8x128xf32>
      tpu.vector_store %arg6[%c0_14, %c0_15], %17 {strides = array<i32>} : memref<8x128xf32, #tpu.memory_space<vmem>>, vector<8x128xf32>,
    } else {
    }
    return
  }
  func.func @transform_0(%arg0: i32, %arg1: i32, %arg2: i32) -> (i32, i32) {
    %c0_i32 = arith.constant 0 : i32
    return %arg0, %arg2 : i32, i32
  }
  func.func @transform_1(%arg0: i32, %arg1: i32, %arg2: i32) -> (i32, i32) {
    %c0_i32 = arith.constant 0 : i32
    return %arg2, %arg1 : i32, i32
  }
  func.func @transform_2(%arg0: i32, %arg1: i32, %arg2: i32) -> (i32, i32) {
    %c0_i32 = arith.constant 0 : i32
    %c0_i32_0 = arith.constant 0 : i32
    return %c0_i32, %arg1 : i32, i32
  }
  func.func @transform_3(%arg0: i32, %arg1: i32, %arg2: i32) -> (i32, i32) {
    %c0_i32 = arith.constant 0 : i32
    return %arg0, %arg1 : i32, i32
  }
}

</mosaic_0001>

<llo_original>
// kernel: quantized_linear.1
$region0: #{quantized_linear.1}
  #allocation0 [shape = 'u32[]', space=smem, size = 0x4, offset = 0x4, fixed_abs, tag = 'smem constant byte address 0x4 - core index']
  #allocation1 [shape = 'u32[144,128]{1,0:T(1,128)}', space=vmem, size = 0x12000, scoped, tag = 'internal scratch']
  %s0 = inlined_call_operand.hbm [shape: f32[8,256], index: 0, kind: input, shape index: {}]
  %s1 = inlined_call_operand.hbm [shape: s8[256,128], index: 1, kind: input, shape index: {}]
  %s2 = inlined_call_operand.vmem [shape: f32[1,128], index: 2, kind: input, shape index: {}]
  %s3 = inlined_call_operand.hbm [shape: f32[8,128], index: 3, kind: output, shape index: {}]
  %s4 = sld [smem:[#allocation0]]
  $region38: #{quantized_linear.1} parent=0
    _
  %s6 = ssub.s32 1, %s4
  %s7 = scalar_select 0, %s6, %s4
  $region1: #{quantized_linear.1} parent=0
    #allocation2 [shape = 'u8[8192]{0}', space=vmem, size = 0x2000, scoped, tag = 'input window, operand 0, single buffered']
    #allocation3 [shape = 's32[1]{0}', space=sflag, size = 0x4, scoped, tag = 'scoped memory for quantized_linear.1']
    #allocation4 [shape = 's32[1]{0}', space=sflag, size = 0x4, scoped, tag = 'scoped memory for quantized_linear.1']
    #allocation5 [shape = 'u8[32768]{0}', space=vmem, size = 0x8000, scoped, tag = 'input window, operand 1, single buffered']
    #allocation6 [shape = 's32[1]{0}', space=sflag, size = 0x4, scoped, tag = 'scoped memory for quantized_linear.1']
    #allocation7 [shape = 'u8[4096]{0}', space=vmem, size = 0x1000, scoped, tag = 'output window, operand 0, single buffered']
    %8 = vsyncpa [#allocation3], 0
    %9 = vsyncpa [#allocation6], 0
    %10 = vsyncpa [#allocation4], 0
    // Predicated region
    $region2: #{quantized_linear.1} parent=1 // pred_check
      _
    $region3: #{quantized_linear.1} parent=1 // pred_check_branch
      %12 = sbr.rel (0) target = $region5
    $region4: #{quantized_linear.1} parent=1 // pred_region
      %s14 = ssub.s32 256, 256
      %15 = vsyncadd [#allocation3], %s14
      %s17 = sshll.u32 [#allocation2], 4
      %s18 = int_to_ptr.vmem [resolvable:$true] %s17
      %20 = dma.hbm_to_vmem [thread:$0]  %s0, 256, %s18, [#allocation3]
    $region5: #{quantized_linear.1} parent=1 // pred_fallthru
      _
    // Predicated region
    $region6: #{quantized_linear.1} parent=1 // pred_check
      _
    $region7: #{quantized_linear.1} parent=1 // pred_check_branch
      %22 = sbr.rel (0) target = $region9
    $region8: #{quantized_linear.1} parent=1 // pred_region
      %s24 = ssub.s32 1024, 1024
      %25 = vsyncadd [#allocation6], %s24
      %s26 = sshll.u32 [#allocation5], 4
      %s27 = int_to_ptr.vmem [resolvable:$true] %s26
      %32 = dma.hbm_to_vmem [thread:$0]  %s1, 1024, %s27, [#allocation6], 128, 128, 8
    $region9: #{quantized_linear.1} parent=1 // pred_fallthru
      _
    // Predicated region
    $region10: #{quantized_linear.1} parent=1 // pred_check
      _
    $region11: #{quantized_linear.1} parent=1 // pred_check_branch
      %34 = sbr.rel (0) target = $region13
    $region12: #{quantized_linear.1} parent=1 // pred_region
      _
    $region13: #{quantized_linear.1} parent=1 // pred_fallthru
      _
    // Predicated region
    $region14: #{quantized_linear.1} parent=1 // pred_check
      _
    $region15: #{quantized_linear.1} parent=1 // pred_check_branch
      %36 = sbr.rel (0) target = $region17
    $region16: #{quantized_linear.1} parent=1 // pred_region
      %37 = dma.done [#allocation3], 256
    $region17: #{quantized_linear.1} parent=1 // pred_fallthru
      _
    // Predicated region
    $region18: #{quantized_linear.1} parent=1 // pred_check
      _
    $region19: #{quantized_linear.1} parent=1 // pred_check_branch
      %39 = sbr.rel (0) target = $region21
    $region20: #{quantized_linear.1} parent=1 // pred_region
      %40 = dma.done [#allocation6], 1024
    $region21: #{quantized_linear.1} parent=1 // pred_fallthru
      _
    %p42 = scmp.eq.s32.totalorder 0, 0
    // Predicated region
    $region22: #{quantized_linear.1} parent=1 // pred_check
      %p43 = pneg %p42
    $region23: #{quantized_linear.1} parent=1 // pred_check_branch
      %45 = sbr.rel (%p43) target = $region25
    $region24: #{quantized_linear.1} parent=1 // pred_region
      %46 = vst [vmem:[#allocation7] sm:$0xff] 0.0
    $region25: #{quantized_linear.1} parent=1 // pred_fallthru
      _
    %v47 = vld [vmem:[#allocation2] sm:$0xff]
    %v48 = vld [vmem:[#allocation2 + $0x8] sm:$0xff]
    %v49 = vpack.c.bf16 %v47, %v47
    %v50 = vpack.c.bf16 %v48, %v48
    %v51 = vld [vmem:[#allocation5] sm:$0xff]
    %v52 = vld [vmem:[#allocation5 + $0x8] sm:$0xff]
    %v53 = vld [vmem:[#allocation5 + $0x10] sm:$0xff]
    %v54 = vld [vmem:[#allocation5 + $0x18] sm:$0xff]
    %v55 = vld [vmem:[#allocation5 + $0x20] sm:$0xff]
    %v56 = vld [vmem:[#allocation5 + $0x28] sm:$0xff]
    %v57 = vld [vmem:[#allocation5 + $0x30] sm:$0xff]
    %v58 = vld [vmem:[#allocation5 + $0x38] sm:$0xff]
    %v59 = vunpack.c.l.s8.bf16 %v51
    %v60 = vunpack.c.h.s8.bf16 %v51
    %v61 = vunpack.c.l.s8.bf16 %v52
    %v62 = vunpack.c.h.s8.bf16 %v52
    %v63 = vunpack.c.l.s8.bf16 %v53
    %v64 = vunpack.c.h.s8.bf16 %v53
    %v65 = vunpack.c.l.s8.bf16 %v54
    %v66 = vunpack.c.h.s8.bf16 %v54
    %v67 = vunpack.c.l.s8.bf16 %v55
    %v68 = vunpack.c.h.s8.bf16 %v55
    %v69 = vunpack.c.l.s8.bf16 %v56
    %v70 = vunpack.c.h.s8.bf16 %v56
    %v71 = vunpack.c.l.s8.bf16 %v57
    %v72 = vunpack.c.h.s8.bf16 %v57
    %v73 = vunpack.c.l.s8.bf16 %v58
    %v74 = vunpack.c.h.s8.bf16 %v58
    %v75 = vld [vmem:[#allocation7] sm:$0xff]
    %76 = vmatprep.subr.bf16.mxu0 0
    %77 = vmatpush1.bf16.msra.mxu0 %v66
    %78 = vmatprep.subr.bf16.mxu0 0
    %79 = vmatpush1.bf16.msra.mxu0 %v65
    %80 = vmatprep.subr.bf16.mxu0 0
    %81 = vmatpush1.bf16.msra.mxu0 %v64
    %82 = vmatprep.subr.bf16.mxu0 0
    %83 = vmatpush1.bf16.msra.mxu0 %v63
    %84 = vmatprep.subr.bf16.mxu0 0
    %85 = vmatpush1.bf16.msra.mxu0 %v62
    %86 = vmatprep.subr.bf16.mxu0 0
    %87 = vmatpush1.bf16.msra.mxu0 %v61
    %88 = vmatprep.subr.bf16.mxu0 0
    %89 = vmatpush1.bf16.msra.mxu0 %v60
    %90 = vmatprep.subr.bf16.mxu0 0
    %91 = vmatpush1.bf16.msra.mxu0 %v59
    %92 = vmatprep.subr.bf16.mxu0 0
    %93 = vmatpush2.bf16.msra.mxu0 %v74
    %94 = vmatprep.subr.bf16.mxu0 0
    %95 = vmatpush2.bf16.msra.mxu0 %v73
    %96 = vmatprep.subr.bf16.mxu0 0
    %97 = vmatpush2.bf16.msra.mxu0 %v72
    %98 = vmatprep.subr.bf16.mxu0 0
    %99 = vmatpush2.bf16.msra.mxu0 %v71
    %100 = vmatprep.subr.bf16.mxu0 0
    %101 = vmatpush2.bf16.msra.mxu0 %v70
    %102 = vmatprep.subr.bf16.mxu0 0
    %103 = vmatpush2.bf16.msra.mxu0 %v69
    %104 = vmatprep.subr.bf16.mxu0 0
    %105 = vmatpush2.bf16.msra.mxu0 %v68
    %106 = vmatprep.subr.bf16.mxu0 0
    %107 = vmatpush2.bf16.msra.mxu0 %v67
    %108 = vmatprep.mubr.bf16.mxu0 %v50
    %109 = vmatmul.mubr.bf16.gmra.mxu0 %v49
    %v110 = vpop.f32.mrf.mxu0
    %v111 = vadd.f32 0.0, %v110
    %v112 = vpop.f32.mrf.mxu0
    %v113 = vpop.f32.mrf.mxu0
    %v114 = vpop.f32.mrf.mxu0
    %115 = vdwg.mxu0
    %v116 = vadd.f32 %v75, %v111
    %117 = vst [vmem:[#allocation7] sm:$0xff] %v116
    // Predicated region
    $region26: #{quantized_linear.1} parent=1 // pred_check
      %p118 = pneg %p42
    $region27: #{quantized_linear.1} parent=1 // pred_check_branch
      %120 = sbr.rel (%p118) target = $region29
    $region28: #{quantized_linear.1} parent=1 // pred_region
      %v121 = vld [vmem:[#allocation7] sm:$0xff]
      %v122 = vld [vmem:[%s2] sm:$0x1]
      %v124 = vlaneseq
      %v125 = vshrl.u32 %v124, 7
      %v126 = vsub.s32 0, %v125
      %v127 = vrot.slane %v122, %v126
      %v129 = vmul.f32 %v121, %v127
      %130 = vst [vmem:[#allocation7] sm:$0xff] %v129
    $region29: #{quantized_linear.1} parent=1 // pred_fallthru
      _
    // Predicated region
    $region30: #{quantized_linear.1} parent=1 // pred_check
      _
    $region31: #{quantized_linear.1} parent=1 // pred_check_branch
      %132 = sbr.rel (0) target = $region33
    $region32: #{quantized_linear.1} parent=1 // pred_region
      %s134 = ssub.s32 128, 128
      %135 = vsyncadd [#allocation4], %s134
      %s137 = sshll.u32 [#allocation7], 4
      %s138 = int_to_ptr.vmem [resolvable:$true] %s137
      %140 = dma.vmem_to_hbm [thread:$0]  %s138, 128, %s3, [#allocation4]
    $region33: #{quantized_linear.1} parent=1 // pred_fallthru
      _
    // Predicated region
    $region34: #{quantized_linear.1} parent=1 // pred_check
      _
    $region35: #{quantized_linear.1} parent=1 // pred_check_branch
      %142 = sbr.rel (0) target = $region37
    $region36: #{quantized_linear.1} parent=1 // pred_region
      %143 = dma.done [#allocation4], 128
    $region37: #{quantized_linear.1} parent=1 // pred_fallthru
      _
    %144 = vsyncpa [#allocation3], 1
    %145 = vsyncpa [#allocation6], 1
    %146 = vsyncpa [#allocation4], 1

</llo_original>
